<compile_context>
chip_gen: v6e
topology: v6e:2x2x1
jax: 0.10.0
libtpu: 0.0.40
codegen_flags: <defaults>
</compile_context>

<pallas_src>
import functools

import jax
import jax.numpy as jnp
from jax.experimental import pallas as pl
from jax.experimental.pallas import tpu as pltpu

_VMEM_LIMIT_BYTES = 32 * 1024 * 1024  # safe on v5e/v6e (128 MiB) and v7x (64 MiB)


def _cdiv(a, b):
    return -(-a // b)


def _round_up(x, m):
    return _cdiv(x, m) * m


def _block_loss(x, t, *, alpha, gamma, eps, one_hot_eps):
    """Per-pixel focal loss for one block.

    x: (C, t_hw) float32 logits (classes on sublanes, pixels on lanes)
    t: (1, t_hw) int32 labels
    returns (1, t_hw) float32 per-pixel loss.
    """
    # softmax over the class (sublane) axis + eps   (F.softmax(input, 1) + eps)
    m = jnp.max(x, axis=0, keepdims=True)                     # (1, t_hw)
    e = jnp.exp(x - m)                                        # (C, t_hw)
    inv = 1.0 / jnp.sum(e, axis=0, keepdims=True)             # one rcp / pixel
    soft = e * inv + eps                                      # (C, t_hw)

    d = 1.0 - soft
    g = float(gamma)
    if g == round(g) and 0.0 <= g <= 8.0:
        # integer gamma (incl. default 2.0): repeated multiplies, no EUP work,
        # and exact torch.pow semantics for a (possibly tiny-negative) base.
        gi = int(round(g))
        if gi == 0:
            weight = jnp.ones_like(soft)
        else:
            weight = d
            for _ in range(gi - 1):
                weight = weight * d
    else:
        # TODO(synk): torch.pow(negative, non-integer) yields NaN when soft
        # exceeds 1 by ~eps; we clamp the base to 0 instead of faking the NaN.
        weight = jnp.power(jnp.maximum(d, 0.0), g)

    log_soft = jnp.log(soft)                                  # (C, t_hw)

    # one_hot(target)+1e-6 over the first C classes, with -alpha folded into
    # the select constants (labels >= C, e.g. the ignore_index, contribute
    # only via the eps term).
    cls = jax.lax.broadcasted_iota(jnp.int32, x.shape, 0)     # (C, t_hw)
    coeff = jnp.where(cls == t,
                      -alpha * (1.0 + one_hot_eps),
                      -alpha * one_hot_eps)
    return jnp.sum(coeff * (weight * log_soft), axis=0, keepdims=True)


def _focal_reduce_kernel(x_ref, t_ref, psum_ref, *, alpha, gamma, eps,
                         one_hot_eps, hw_valid, t_hw, n_blocks, mask_padding):
    """'mean'/'sum' path: lane-dense partial sum per (batch, pixel-chunk)."""
    c = pl.program_id(1)
    j = pl.program_id(2)

    @pl.when(j == 0)
    def _():
        psum_ref[...] = jnp.zeros_like(psum_ref)

    loss = _block_loss(x_ref[0].astype(jnp.float32), t_ref[0],
                       alpha=alpha, gamma=gamma, eps=eps,
                       one_hot_eps=one_hot_eps)               # (1, t_hw)

    if mask_padding:
        # Only the globally-last block is ragged; mask its trailing lanes,
        # which hold garbage loaded past the end of the un-padded array.
        blk = c * pl.num_programs(2) + j
        is_ragged = blk == (n_blocks - 1)

        @pl.when(is_ragged)
        def _():
            lane = blk * t_hw + jax.lax.broadcasted_iota(jnp.int32,
                                                         loss.shape, 1)
            psum_ref[...] += jnp.where(lane < hw_valid, loss, 0.0)[None, None]

        @pl.when(jnp.logical_not(is_ragged))
        def _():
            psum_ref[...] += loss[None, None]
    else:
        psum_ref[...] += loss[None, None]


def _focal_pixel_kernel(x_ref, t_ref, out_ref, *, alpha, gamma, eps,
                        one_hot_eps):
    """'none' path: lane-dense per-pixel loss output (OOB lanes dropped)."""
    loss = _block_loss(x_ref[0].astype(jnp.float32), t_ref[0],
                       alpha=alpha, gamma=gamma, eps=eps,
                       one_hot_eps=one_hot_eps)
    out_ref[...] = loss[None].astype(out_ref.dtype)


def focal_loss_pallas(logits_nchw, target, *, alpha=0.25, gamma=2.0,
                      reduction='mean', eps=1e-8, ignore_index=30,
                      one_hot_eps=1e-6, t_hw_cap=32768,
                      vmem_budget_bytes=12 * 1024 * 1024):
    # TODO(synk): only scalar (float) alpha is supported; the torch spec also
    # accepts a per-class alpha array.
    B, C, H, W = logits_nchw.shape
    assert target.shape == (B, H, W)
    # scatter over (ignore_index+1) channels then slice to C requires this:
    assert C <= ignore_index + 1
    HW = H * W

    # NCHW-native view (pure reshape: no transpose, no pad, no dtype cast).
    x = logits_nchw.reshape(B, C, HW)
    t = target.reshape(B, 1, HW).astype(jnp.int32)

    # Lane tile from a conservative per-step VMEM budget (~12 MiB working
    # set), safe against the scoped defaults on v5e (16 MiB), v6e (32 MiB)
    # and v7x (32 MiB of 64 MiB physical):
    #   double-buffered x block (2*C*itemsize / lane) + targets (2*4) +
    #   ~7 f32 (C, t_hw) in-kernel temporaries + resident f32 accumulator.
    itemsize = jnp.dtype(logits_nchw.dtype).itemsize
    per_lane = 2 * C * itemsize + 2 * 4 + 7 * C * 4 + 2 * 4
    cap = max(128, min(int(t_hw_cap),
                       (vmem_budget_bytes // per_lane) // 128 * 128))
    n_j0 = _cdiv(HW, cap)
    t_hw = _round_up(_cdiv(HW, n_j0), 128)
    n_blocks = _cdiv(HW, t_hw)
    mask_padding = (n_blocks * t_hw != HW)

    x_spec_2d = pl.BlockSpec((1, C, t_hw), lambda p, j: (p, 0, j))
    t_spec_2d = pl.BlockSpec((1, 1, t_hw), lambda p, j: (p, 0, j))

    if reduction == 'none':
        kernel = functools.partial(_focal_pixel_kernel, alpha=alpha,
                                   gamma=gamma, eps=eps,
                                   one_hot_eps=one_hot_eps)
        per_pixel = pl.pallas_call(
            kernel,
            out_shape=jax.ShapeDtypeStruct((B, 1, HW), logits_nchw.dtype),
            grid_spec=pltpu.PrefetchScalarGridSpec(
                num_scalar_prefetch=0,
                grid=(B, n_blocks),
                in_specs=[x_spec_2d, t_spec_2d],
                out_specs=pl.BlockSpec((1, 1, t_hw), lambda p, j: (p, 0, j)),
            ),
            compiler_params=pltpu.CompilerParams(
                dimension_semantics=("parallel", "parallel"),
                vmem_limit_bytes=_VMEM_LIMIT_BYTES),
        )(x, t)
        # metadata-only reshape; no output copy / slice
        return per_pixel.reshape(B, H, W)

    if reduction not in ('mean', 'sum'):
        raise NotImplementedError(f'Invalid reduction mode: {reduction}')

    # Split the pixel-block axis into a 'parallel' chunk axis (own accumulator
    # column per chunk -> both v7x TCs busy even for B=1 / odd B) and an
    # innermost 'arbitrary' reduction axis. Only split when it divides evenly
    # so no fully-out-of-bounds blocks are generated.
    n_chunks = 2 if (n_blocks >= 2 and n_blocks % 2 == 0) else 1
    n_j = n_blocks // n_chunks

    kernel = functools.partial(_focal_reduce_kernel, alpha=alpha, gamma=gamma,
                               eps=eps, one_hot_eps=one_hot_eps,
                               hw_valid=HW, t_hw=t_hw, n_blocks=n_blocks,
                               mask_padding=mask_padding)

    # One lane-dense partial-sum vector per (batch, chunk); the per-pixel loss
    # is never written to HBM.
    partials = pl.pallas_call(
        kernel,
        out_shape=jax.ShapeDtypeStruct((B, n_chunks, 1, t_hw), jnp.float32),
        grid_spec=pltpu.PrefetchScalarGridSpec(
            num_scalar_prefetch=0,
            grid=(B, n_chunks, n_j),
            in_specs=[
                pl.BlockSpec((1, C, t_hw),
                             lambda p, c, j: (p, 0, c * n_j + j)),
                pl.BlockSpec((1, 1, t_hw),
                             lambda p, c, j: (p, 0, c * n_j + j)),
            ],
            out_specs=pl.BlockSpec((1, 1, 1, t_hw),
                                   lambda p, c, j: (p, c, 0, 0)),
        ),
        compiler_params=pltpu.CompilerParams(
            dimension_semantics=("parallel", "parallel", "arbitrary"),
            vmem_limit_bytes=_VMEM_LIMIT_BYTES),
    )(x, t)

    total = jnp.sum(partials)
    if reduction == 'mean':
        total = total / jnp.float32(B * HW)
    return total.astype(logits_nchw.dtype)


def focal_loss_ref(logits_nchw, target, *, alpha=0.25, gamma=2.0,
                   reduction='mean', eps=1e-8, ignore_index=30,
                   one_hot_eps=1e-6):
    """Pure-JAX reference mirroring the PyTorch semantics."""
    C = logits_nchw.shape[1]
    soft = jax.nn.softmax(logits_nchw.astype(jnp.float32), axis=1) + eps
    oh = jax.nn.one_hot(target, ignore_index + 1, axis=1, dtype=jnp.float32)
    oh = oh[:, :C] + one_hot_eps
    weight = (1.0 - soft) ** gamma
    focal = -alpha * weight * jnp.log(soft)
    loss_tmp = jnp.sum(oh * focal, axis=1)
    if reduction == 'none':
        return loss_tmp
    if reduction == 'mean':
        return jnp.mean(loss_tmp)
    return jnp.sum(loss_tmp)


if __name__ == "__main__":
    key = jax.random.PRNGKey(0)
    k1, k2, k3 = jax.random.split(key, 3)

    B, C, H, W = 2, 4, 16, 16
    ignore_index = 30

    logits = jax.random.normal(k1, (B, C, H, W), dtype=jnp.float32)
    target = jax.random.randint(k2, (B, H, W), 0, C, dtype=jnp.int32)
    # sprinkle in some ignore_index labels (they contribute only via eps)
    ignore_mask = jax.random.bernoulli(k3, 0.1, (B, H, W))
    target = jnp.where(ignore_mask, ignore_index, target)

    # reduction='mean' (module default): reduce-only kernel, no per-pixel HBM out
    loss = focal_loss_pallas(logits, target, reduction='mean',
                             ignore_index=ignore_index)
    loss = jax.block_until_ready(loss)
    ref = focal_loss_ref(logits, target, reduction='mean',
                         ignore_index=ignore_index)
    assert jnp.allclose(loss, ref, rtol=1e-5, atol=1e-6), (loss, ref)

    # reduction='sum'
    loss_s = focal_loss_pallas(logits, target, reduction='sum',
                               ignore_index=ignore_index)
    ref_s = focal_loss_ref(logits, target, reduction='sum',
                           ignore_index=ignore_index)
    assert jnp.allclose(jax.block_until_ready(loss_s), ref_s,
                        rtol=1e-5, atol=1e-4), (loss_s, ref_s)

    # reduction='none': lane-dense per-pixel path (no output slice / copy)
    loss_px = focal_loss_pallas(logits, target, reduction='none',
                                ignore_index=ignore_index)
    ref_px = focal_loss_ref(logits, target, reduction='none',
                            ignore_index=ignore_index)
    assert jnp.allclose(jax.block_until_ready(loss_px), ref_px,
                        rtol=1e-5, atol=1e-6)

    # multi-block + parallel-chunk reduce path (forced small tile: HW=256 ->
    # 2 blocks of 128 -> n_chunks=2)
    loss_mb = focal_loss_pallas(logits, target, reduction='mean',
                                ignore_index=ignore_index, t_hw_cap=128)
    assert jnp.allclose(jax.block_until_ready(loss_mb), ref,
                        rtol=1e-5, atol=1e-6), (loss_mb, ref)

    # HW not a multiple of 128: ragged last block, no host-side padding
    H2, W2 = 9, 13
    logits2 = jax.random.normal(k1, (B, C, H2, W2), dtype=jnp.float32)
    target2 = jax.random.randint(k2, (B, H2, W2), 0, C, dtype=jnp.int32)
    loss2 = focal_loss_pallas(logits2, target2, reduction='mean',
                              ignore_index=ignore_index)
    ref2 = focal_loss_ref(logits2, target2, reduction='mean',
                          ignore_index=ignore_index)
    assert jnp.allclose(jax.block_until_ready(loss2), ref2,
                        rtol=1e-5, atol=1e-6), (loss2, ref2)
    loss2n = focal_loss_pallas(logits2, target2, reduction='none',
                               ignore_index=ignore_index)
    ref2n = focal_loss_ref(logits2, target2, reduction='none',
                           ignore_index=ignore_index)
    assert jnp.allclose(jax.block_until_ready(loss2n), ref2n,
                        rtol=1e-5, atol=1e-6)

    # ragged + chunked reduce together (HW=200 with 128-lane tiles: 2 blocks,
    # last one ragged and lane-masked)
    H3, W3 = 10, 20
    logits3 = jax.random.normal(k1, (B, C, H3, W3), dtype=jnp.float32)
    target3 = jax.random.randint(k2, (B, H3, W3), 0, C, dtype=jnp.int32)
    loss3 = focal_loss_pallas(logits3, target3, reduction='mean',
                              ignore_index=ignore_index, t_hw_cap=128)
    ref3 = focal_loss_ref(logits3, target3, reduction='mean',
                          ignore_index=ignore_index)
    assert jnp.allclose(jax.block_until_ready(loss3), ref3,
                        rtol=1e-5, atol=1e-6), (loss3, ref3)

    print("KERNEL_OK")
</pallas_src>

<mosaic_0001>
module attributes {stable_mosaic.version = 11 : i64} {
  func.func @_focal_reduce_kernel(%arg0: i32, %arg1: i32, %arg2: i32, %arg3: memref<1x4x256xf32, #tpu.memory_space<vmem>>, %arg4: memref<1x1x256xi32, #tpu.memory_space<vmem>>, %arg5: memref<1x1x1x256xf32, #tpu.memory_space<vmem>>) attributes {dimension_semantics = [#tpu.dimension_semantics<parallel>, #tpu.dimension_semantics<parallel>, #tpu.dimension_semantics<arbitrary>], iteration_bounds = array<i64: 2, 1, 1>, scalar_prefetch = 0 : i64, scratch_operands = 0 : i64, tpu.core_type = #tpu.core_type<tc>, window_params = [{transform_indices = @transform_0, window_bounds = array<i64: 1, 4, 256>}, {transform_indices = @transform_1, window_bounds = array<i64: 1, 1, 256>}, {transform_indices = @transform_2, window_bounds = array<i64: 1, 1, 1, 256>}]} {
    %c0_i32 = arith.constant 0 : i32
    %0 = arith.cmpi eq, %arg2, %c0_i32 : i32
    %1 = arith.extui %0 : i1 to i32
    %c0_i32_0 = arith.constant 0 : i32
    %2 = arith.cmpi ne, %1, %c0_i32_0 : i32
    scf.if %2 {
      %cst_21 = arith.constant 0.000000e+00 : f32
      %38 = vector.broadcast %cst_21 : f32 to vector<1x1x1x256xf32>
      %c0_22 = arith.constant 0 : index
      %c0_23 = arith.constant 0 : index
      %c0_24 = arith.constant 0 : index
      %c0_25 = arith.constant 0 : index
      %39 = vector.load %arg5[%c0_22, %c0_23, %c0_24, %c0_25] : memref<1x1x1x256xf32, #tpu.memory_space<vmem>>, vector<1x1x1x256xf32>
      tpu.vector_store %arg5[%c0_22, %c0_23, %c0_24, %c0_25], %38 {strides = array<i32>} : memref<1x1x1x256xf32, #tpu.memory_space<vmem>>, vector<1x1x1x256xf32>,
    } else {
    }
    %c0 = arith.constant 0 : index
    %c0_1 = arith.constant 0 : index
    %c0_2 = arith.constant 0 : index
    %3 = vector.load %arg3[%c0, %c0_1, %c0_2] : memref<1x4x256xf32, #tpu.memory_space<vmem>>, vector<1x4x256xf32>
    %4 = vector.shape_cast %3 : vector<1x4x256xf32> to vector<4x256xf32>
    %c0_3 = arith.constant 0 : index
    %c0_4 = arith.constant 0 : index
    %c0_5 = arith.constant 0 : index
    %5 = vector.load %arg4[%c0_3, %c0_4, %c0_5] : memref<1x1x256xi32, #tpu.memory_space<vmem>>, vector<1x1x256xi32>
    %6 = vector.shape_cast %5 : vector<1x1x256xi32> to vector<1x256xi32>
    %cst = arith.constant dense<0xFF800000> : vector<256xf32>
    %7 = vector.multi_reduction <maximumf>, %4, %cst [0] : vector<4x256xf32> to vector<256xf32>
    %8 = vector.shape_cast %7 : vector<256xf32> to vector<1x256xf32>
    %9 = vector.broadcast %8 : vector<1x256xf32> to vector<4x256xf32>
    %10 = arith.subf %4, %9 : vector<4x256xf32>
    %11 = math.exp %10 : vector<4x256xf32>
    %cst_6 = arith.constant dense<0.000000e+00> : vector<256xf32>
    %12 = vector.multi_reduction <add>, %11, %cst_6 [0] : vector<4x256xf32> to vector<256xf32>
    %13 = vector.shape_cast %12 : vector<256xf32> to vector<1x256xf32>
    %cst_7 = arith.constant 1.000000e+00 : f32
    %14 = vector.broadcast %cst_7 : f32 to vector<1x256xf32>
    %15 = arith.divf %14, %13 : vector<1x256xf32>
    %16 = vector.broadcast %15 : vector<1x256xf32> to vector<4x256xf32>
    %17 = arith.mulf %11, %16 : vector<4x256xf32>
    %cst_8 = arith.constant 9.99999993E-9 : f32
    %18 = vector.broadcast %cst_8 : f32 to vector<4x256xf32>
    %19 = arith.addf %17, %18 : vector<4x256xf32>
    %cst_9 = arith.constant 1.000000e+00 : f32
    %20 = vector.broadcast %cst_9 : f32 to vector<4x256xf32>
    %21 = arith.subf %20, %19 : vector<4x256xf32>
    %22 = arith.mulf %21, %21 : vector<4x256xf32>
    %23 = math.log %19 : vector<4x256xf32>
    %24 = tpu.iota {dimensions = array<i32: 0>} : vector<4x256xi32>
    %25 = vector.broadcast %6 : vector<1x256xi32> to vector<4x256xi32>
    %26 = arith.cmpi eq, %24, %25 : vector<4x256xi32>
    %cst_10 = arith.constant -0.250000238 : f32
    %cst_11 = arith.constant -2.500000e-07 : f32
    %27 = vector.broadcast %cst_10 : f32 to vector<4x256xf32>
    %28 = vector.broadcast %cst_11 : f32 to vector<4x256xf32>
    %29 = arith.select %26, %27, %28 : vector<4x256xi1>, vector<4x256xf32>
    %30 = arith.mulf %22, %23 : vector<4x256xf32>
    %31 = arith.mulf %29, %30 : vector<4x256xf32>
    %cst_12 = arith.constant dense<0.000000e+00> : vector<256xf32>
    %32 = vector.multi_reduction <add>, %31, %cst_12 [0] : vector<4x256xf32> to vector<256xf32>
    %33 = vector.shape_cast %32 : vector<256xf32> to vector<1x256xf32>
    %c0_13 = arith.constant 0 : index
    %c0_14 = arith.constant 0 : index
    %c0_15 = arith.constant 0 : index
    %c0_16 = arith.constant 0 : index
    %34 = vector.load %arg5[%c0_13, %c0_14, %c0_15, %c0_16] : memref<1x1x1x256xf32, #tpu.memory_space<vmem>>, vector<1x1x1x256xf32>
    %35 = vector.shape_cast %33 : vector<1x256xf32> to vector<1x1x1x256xf32>
    %36 = arith.addf %34, %35 : vector<1x1x1x256xf32>
    %c0_17 = arith.constant 0 : index
    %c0_18 = arith.constant 0 : index
    %c0_19 = arith.constant 0 : index
    %c0_20 = arith.constant 0 : index
    %37 = vector.load %arg5[%c0_17, %c0_18, %c0_19, %c0_20] : memref<1x1x1x256xf32, #tpu.memory_space<vmem>>, vector<1x1x1x256xf32>
    tpu.vector_store %arg5[%c0_17, %c0_18, %c0_19, %c0_20], %36 {strides = array<i32>} : memref<1x1x1x256xf32, #tpu.memory_space<vmem>>, vector<1x1x1x256xf32>,
    return
  }
  func.func @transform_0(%arg0: i32, %arg1: i32, %arg2: i32) -> (i32, i32, i32) {
    %c1_i32 = arith.constant 1 : i32
    %0 = arith.muli %arg1, %c1_i32 : i32
    %1 = arith.addi %0, %arg2 : i32
    %c0_i32 = arith.constant 0 : i32
    %c0_i32_0 = arith.constant 0 : i32
    return %arg0, %c0_i32, %1 : i32, i32, i32
  }
  func.func @transform_1(%arg0: i32, %arg1: i32, %arg2: i32) -> (i32, i32, i32) {
    %c1_i32 = arith.constant 1 : i32
    %0 = arith.muli %arg1, %c1_i32 : i32
    %1 = arith.addi %0, %arg2 : i32
    %c0_i32 = arith.constant 0 : i32
    %c0_i32_0 = arith.constant 0 : i32
    return %arg0, %c0_i32, %1 : i32, i32, i32
  }
  func.func @transform_2(%arg0: i32, %arg1: i32, %arg2: i32) -> (i32, i32, i32, i32) {
    %c0_i32 = arith.constant 0 : i32
    %c0_i32_0 = arith.constant 0 : i32
    %c0_i32_1 = arith.constant 0 : i32
    return %arg0, %arg1, %c0_i32, %c0_i32_0 : i32, i32, i32, i32
  }
}

</mosaic_0001>

<llo_original>
// kernel: tpu_custom_call.1
$region0: #{tpu_custom_call.1}
  #allocation0 [shape = 'u32[]', space=smem, size = 0x4, offset = 0x4, fixed_abs, tag = 'smem constant byte address 0x4 - core index']
  #allocation1 [shape = 'u32[144,128]{1,0:T(1,128)}', space=vmem, size = 0x12000, scoped, tag = 'internal scratch']
  %s0 = inlined_call_operand.hbm [shape: f32[2,4,256], index: 0, kind: input, shape index: {}]
  %s1 = inlined_call_operand.hbm [shape: s32[2,1,256], index: 1, kind: input, shape index: {}]
  %s2 = inlined_call_operand.hbm [shape: f32[2,1,1,256], index: 2, kind: output, shape index: {}]
  %s3 = sld [smem:[#allocation0]]
  $region53: #{tpu_custom_call.1} parent=0
    _
  %s5 = ssub.s32 1, %s3
  %s6 = scalar_select 0, %s5, %s3
  $region1: #{tpu_custom_call.1} parent=0
    #allocation2 [shape = 'u8[8192]{0}', space=vmem, size = 0x2000, scoped, tag = 'input window, operand 0']
    #allocation3 [shape = 's32[2]{0}', space=sflag, size = 0x8, scoped, tag = 'scoped memory for tpu_custom_call.1']
    #allocation4 [shape = 's32[2]{0}', space=sflag, size = 0x8, scoped, tag = 'scoped memory for tpu_custom_call.1']
    #allocation5 [shape = 'u8[2048]{0}', space=vmem, size = 0x800, scoped, tag = 'input window, operand 1']
    #allocation6 [shape = 's32[2]{0}', space=sflag, size = 0x8, scoped, tag = 'scoped memory for tpu_custom_call.1']
    #allocation7 [shape = 'u8[2048]{0}', space=vmem, size = 0x800, scoped, tag = 'output window, operand 0']
    %7 = vsyncpa [#allocation3], 0
    %s8 = scalar_lea.sflag [#allocation3], 1
    %9 = vsyncpa %s8, 0
    %10 = vsyncpa [#allocation6], 0
    %s11 = scalar_lea.sflag [#allocation6], 1
    %12 = vsyncpa %s11, 0
    %13 = vsyncpa [#allocation4], 0
    %s14 = scalar_lea.sflag [#allocation4], 1
    %15 = vsyncpa %s14, 0
    loop: start=0, step=1, limit=4
    $region2: #{tpu_custom_call.1} parent=1 // loop_pre_header
      _
    $region3: #{tpu_custom_call.1} parent=1 // loop_header
      %s17 = sphi 0, %s21
      %p18 = scmp.ge.s32.totalorder %s17, 4
      %s24 = sphi 0, %s43
      %s25 = sphi 0, %s39
      %s26 = sphi 0, %s35
      %s27 = sphi 0, %s24
      %s28 = sphi 0, %s25
      %s29 = sphi 0, %s26
      %s30 = sphi 0, %s27
      %s31 = sphi 0, %s28
      %s32 = sphi 0, %s29
      %s50 = sphi 0, %s52
      %s53 = sphi 0, %s50
      %s54 = sphi 0, %s53
      %s70 = sphi 0, %s54
      %s80 = sphi 0, %s82
      %s83 = sphi 0, %s80
      %s84 = sphi 0, %s83
      %s100 = sphi 0, %s84
      %s108 = sphi 0, %s110
      %s111 = sphi 0, %s108
      %s112 = sphi 0, %s111
      %s128 = sphi 0, %s112
    $region4: #{tpu_custom_call.1} parent=1 // loop_header_branch
      %20 = sbr.rel (%p18) target = $region8
    $region5: #{tpu_custom_call.1} parent=1 // loop_body
      %s22 = ssub.s32 %s17, 1
      %s23 = ssub.s32 %s17, 2
      %s33 = sadd.s32 1, %s26
      %p34 = scmp.ge.s32.totalorder %s33, 1
      %s35 = scalar_select %p34, 0, %s33
      %s36 = sadd.s32 1, %s25
      %s37 = scalar_select %p34, %s36, %s25
      %p38 = scmp.ge.s32.totalorder %s37, 1
      %s39 = scalar_select %p38, 0, %s37
      %s40 = sadd.s32 1, %s24
      %s41 = scalar_select %p38, %s40, %s24
      %p42 = scmp.ge.s32.totalorder %s41, 2
      %s43 = scalar_select %p42, 0, %s41
      %s44 = sadd.s32 %s25, %s26
      %s45 = sadd.s32 %s39, %s35
      %s46 = ssub.s32 %s24, %s43
      %s47 = ssub.s32 %s44, %s45
      %s48 = sor.u32 %s46, %s47
      %p49 = scmp.eq.s32.totalorder %s48, 0
      %s51 = sadd.s32 %s50, 1
      %s52 = scalar_select %p49, %s50, %s51
      %p55 = pneg %p49
      %p56 = scmp.eq.s32.totalorder %s17, 1
      %p57 = por %p55, %p56
      %p58 = scmp.ne.s32.totalorder %s50, %s53
      %p59 = scmp.eq.s32.totalorder %s17, 0
      %p60 = por %p58, %p59
      %p61 = scmp.ne.s32.totalorder %s50, %s53
      %p62 = scmp.eq.s32.totalorder %s22, 1
      %p63 = por %p61, %p62
      %p64 = scmp.ne.s32.totalorder %s53, %s54
      %p65 = scmp.eq.s32.totalorder %s22, 0
      %p66 = por %p64, %p65
      %p67 = scmp.ne.s32.totalorder %s53, %s54
      %p68 = scmp.eq.s32.totalorder %s23, 1
      %p69 = por %p67, %p68
      %p71 = scmp.ne.s32.totalorder %s54, %s70
      %p72 = scmp.eq.s32.totalorder %s23, 0
      %p73 = por %p71, %p72
      %s74 = sadd.s32 %s25, %s26
      %s75 = sadd.s32 %s39, %s35
      %s76 = ssub.s32 %s24, %s43
      %s77 = ssub.s32 %s74, %s75
      %s78 = sor.u32 %s76, %s77
      %p79 = scmp.eq.s32.totalorder %s78, 0
      %s81 = sadd.s32 %s80, 1
      %s82 = scalar_select %p79, %s80, %s81
      %p85 = pneg %p79
      %p86 = scmp.eq.s32.totalorder %s17, 1
      %p87 = por %p85, %p86
      %p88 = scmp.ne.s32.totalorder %s80, %s83
      %p89 = scmp.eq.s32.totalorder %s17, 0
      %p90 = por %p88, %p89
      %p91 = scmp.ne.s32.totalorder %s80, %s83
      %p92 = scmp.eq.s32.totalorder %s22, 1
      %p93 = por %p91, %p92
      %p94 = scmp.ne.s32.totalorder %s83, %s84
      %p95 = scmp.eq.s32.totalorder %s22, 0
      %p96 = por %p94, %p95
      %p97 = scmp.ne.s32.totalorder %s83, %s84
      %p98 = scmp.eq.s32.totalorder %s23, 1
      %p99 = por %p97, %p98
      %p101 = scmp.ne.s32.totalorder %s84, %s100
      %p102 = scmp.eq.s32.totalorder %s23, 0
      %p103 = por %p101, %p102
      %s104 = ssub.s32 %s24, %s43
      %s105 = ssub.s32 %s25, %s39
      %s106 = sor.u32 %s104, %s105
      %p107 = scmp.eq.s32.totalorder %s106, 0
      %s109 = sadd.s32 %s108, 1
      %s110 = scalar_select %p107, %s108, %s109
      %p113 = pneg %p107
      %p114 = scmp.eq.s32.totalorder %s17, 1
      %p115 = por %p113, %p114
      %p116 = scmp.ne.s32.totalorder %s108, %s111
      %p117 = scmp.eq.s32.totalorder %s17, 0
      %p118 = por %p116, %p117
      %p119 = scmp.ne.s32.totalorder %s108, %s111
      %p120 = scmp.eq.s32.totalorder %s22, 1
      %p121 = por %p119, %p120
      %p122 = scmp.ne.s32.totalorder %s111, %s112
      %p123 = scmp.eq.s32.totalorder %s22, 0
      %p124 = por %p122, %p123
      %p125 = scmp.ne.s32.totalorder %s111, %s112
      %p126 = scmp.eq.s32.totalorder %s23, 1
      %p127 = por %p125, %p126
      %p129 = scmp.ne.s32.totalorder %s112, %s128
      %p130 = scmp.eq.s32.totalorder %s23, 0
      %p131 = por %p129, %p130
      %p132 = scmp.le.s32.totalorder 1, %s17
      %p133 = scmp.lt.s32.totalorder %s17, 3
      %p134 = pnand %p132, %p133
      %p135 = pneg %p134
      // Predicated region
      $region9: #{tpu_custom_call.1} parent=5 // pred_check
        _
      $region10: #{tpu_custom_call.1} parent=5 // pred_check_branch
        %137 = sbr.rel (%p134) target = $region12
      $region11: #{tpu_custom_call.1} parent=5 // pred_region
        %s138 = ssub.s32 %s17, 1
      $region12: #{tpu_custom_call.1} parent=5 // pred_fallthru
        _
      %p139 = scmp.lt.s32.totalorder %s17, 2
      // Predicated region
      $region13: #{tpu_custom_call.1} parent=5 // pred_check
        %p140 = pneg %p139
      $region14: #{tpu_custom_call.1} parent=5 // pred_check_branch
        %142 = sbr.rel (%p140) target = $region16
      $region15: #{tpu_custom_call.1} parent=5 // pred_region
        // Predicated region
        $region17: #{tpu_custom_call.1} parent=15 // pred_check
          %p143 = pneg %p60
        $region18: #{tpu_custom_call.1} parent=15 // pred_check_branch
          %145 = sbr.rel (%p143) target = $region20
        $region19: #{tpu_custom_call.1} parent=15 // pred_region
          %s146 = sand.u32 %s50, 1
          %s147 = scalar_lea.sflag [#allocation3], %s146
          %s148 = sand.u32 %s50, 1
          %s149 = smul.addr %s148, 8
          %s150 = scalar_lea.vmem [#allocation2], %s149
          %s151 = sadd.s32 %s25, %s26
          %s152 = smul.u32 2, %s151
          %s154 = ssub.s32 128, 128
          %155 = vsyncadd %s147, %s154
          %s156 = smul.addr %s24, 2
          %s157 = sadd.s32 %s152, %s156
          %s158 = smul.addr %s157, 64
          %s159 = scalar_lea.hbm %s0, %s158
          %s161 = sshll.u32 %s150, 4
          %s162 = int_to_ptr.vmem [resolvable:$true] %s161
          %164 = dma.hbm_to_vmem [thread:$0]  %s159, 128, %s162, %s147
        $region20: #{tpu_custom_call.1} parent=15 // pred_fallthru
          _
        // Predicated region
        $region21: #{tpu_custom_call.1} parent=15 // pred_check
          %p165 = pneg %p90
        $region22: #{tpu_custom_call.1} parent=15 // pred_check_branch
          %167 = sbr.rel (%p165) target = $region24
        $region23: #{tpu_custom_call.1} parent=15 // pred_region
          %s168 = sand.u32 %s80, 1
          %s169 = scalar_lea.sflag [#allocation6], %s168
          %s170 = sand.u32 %s80, 1
          %s171 = smul.addr %s170, 2
          %s172 = scalar_lea.vmem [#allocation5], %s171
          %s173 = sadd.s32 %s25, %s26
          %s174 = smul.u32 2, %s173
          %s176 = ssub.s32 32, 32
          %177 = vsyncadd %s169, %s176
          %s178 = smul.addr %s24, 2
          %s179 = sadd.s32 %s174, %s178
          %s180 = smul.addr %s179, 16
          %s181 = scalar_lea.hbm %s1, %s180
          %s183 = sshll.u32 %s172, 4
          %s184 = int_to_ptr.vmem [resolvable:$true] %s183
          %186 = dma.hbm_to_vmem [thread:$0]  %s181, 32, %s184, %s169
        $region24: #{tpu_custom_call.1} parent=15 // pred_fallthru
          _
      $region16: #{tpu_custom_call.1} parent=5 // pred_fallthru
        _
      %p187 = scmp.le.s32.totalorder 1, %s17
      %p188 = scmp.lt.s32.totalorder %s17, 3
      %p189 = pnand %p187, %p188
      %p190 = pneg %p189
      // Predicated region
      $region25: #{tpu_custom_call.1} parent=5 // pred_check
        _
      $region26: #{tpu_custom_call.1} parent=5 // pred_check_branch
        %192 = sbr.rel (%p189) target = $region28
      $region27: #{tpu_custom_call.1} parent=5 // pred_region
        %s193 = ssub.s32 %s17, 1
        %s194 = sand.u32 %s53, 1
        %s195 = scalar_lea.sflag [#allocation3], %s194
        %s196 = sand.u32 %s53, 1
        %s197 = smul.addr %s196, 8
        %s198 = scalar_lea.vmem [#allocation2], %s197
        // Predicated region
        $region29: #{tpu_custom_call.1} parent=27 // pred_check
          %p199 = pneg %p66
        $region30: #{tpu_custom_call.1} parent=27 // pred_check_branch
          %201 = sbr.rel (%p199) target = $region32
        $region31: #{tpu_custom_call.1} parent=27 // pred_region
          %202 = dma.done %s195, 128
        $region32: #{tpu_custom_call.1} parent=27 // pred_fallthru
          _
        %s203 = sand.u32 %s83, 1
        %s204 = scalar_lea.sflag [#allocation6], %s203
        %s205 = sand.u32 %s83, 1
        %s206 = smul.addr %s205, 2
        %s207 = scalar_lea.vmem [#allocation5], %s206
        // Predicated region
        $region33: #{tpu_custom_call.1} parent=27 // pred_check
          %p208 = pneg %p96
        $region34: #{tpu_custom_call.1} parent=27 // pred_check_branch
          %210 = sbr.rel (%p208) target = $region36
        $region35: #{tpu_custom_call.1} parent=27 // pred_region
          %211 = dma.done %s204, 32
        $region36: #{tpu_custom_call.1} parent=27 // pred_fallthru
          _
        %s212 = sand.u32 %s53, 1
        %s213 = scalar_lea.sflag [#allocation3], %s212
        %s214 = sand.u32 %s53, 1
        %s215 = smul.addr %s214, 8
        %s216 = scalar_lea.vmem [#allocation2], %s215
        %p217 = pneg %p66
        %p218 = pneg %p63
        %s219 = sand.u32 %s83, 1
        %s220 = scalar_lea.sflag [#allocation6], %s219
        %s221 = sand.u32 %s83, 1
        %s222 = smul.addr %s221, 2
        %s223 = scalar_lea.vmem [#allocation5], %s222
        %p224 = pneg %p96
        %p225 = pneg %p93
        %p226 = pneg %p124
        %p227 = pneg %p121
        %s228 = sand.u32 %s111, 1
        %s229 = scalar_lea.sflag [#allocation4], %s228
        %s230 = sand.u32 %s111, 1
        %s231 = smul.addr %s230, 2
        %s232 = scalar_lea.vmem [#allocation7], %s231
        %s233 = sadd.s32 %s28, %s29
        %s234 = smul.u32 2, %s233
        %s235 = sadd.s32 %s28, %s29
        %s236 = smul.u32 2, %s235
        %p237 = scmp.eq.s32.totalorder %s29, 0
        // Predicated region
        $region37: #{tpu_custom_call.1} parent=27 // pred_check
          %p238 = pneg %p237
        $region38: #{tpu_custom_call.1} parent=27 // pred_check_branch
          %240 = sbr.rel (%p238) target = $region40
        $region39: #{tpu_custom_call.1} parent=27 // pred_region
          %v241 = vlaneseq
          %vm242 = vcmp.ge.s32.totalorder %v241, 0
          %vm243 = vcmp.lt.s32.totalorder %v241, 256
          %vm244 = vmand %vm242, %vm243
          %245 = vst.msk [vmem:[%s232] sm:$0x3] %vm244, 0.0
        $region40: #{tpu_custom_call.1} parent=27 // pred_fallthru
          _
        %v246 = vld [vmem:[%s198] sm:$0xff]
        %v247 = vld [vmem:[%s207] sm:$0x3]
        %v249 = vcombine.high %v246, %v246
        %vm251 = vcmask 1043456
        %v252 = vsel %vm251, %v246, -inf
        %v253 = vrot.slane %v252, 4
        %v254 = vmax.f32 %v252, %v253
        %v255 = vrot.slane %v254, 2
        %v256 = vmax.f32 %v254, %v255
        %v257 = vrot.slane %v256, 1
        %v258 = vmax.f32 %v256, %v257
        %v259 = vsel %vm251, %v249, -inf
        %v260 = vrot.slane %v259, 4
        %v261 = vmax.f32 %v259, %v260
        %v262 = vrot.slane %v261, 2
        %v263 = vmax.f32 %v261, %v262
        %v264 = vrot.slane %v263, 1
        %v265 = vmax.f32 %v263, %v264
        %v268 = vcombine.low %v258, %v265
        %v270 = vsub.f32 %v246, %v268
        %v271 = vmul.f32 %v270, 1.442695
        %v272 = vpow.pop %v271
        %v274 = vcombine.high %v272, %v272
        %v276 = vsel %vm251, %v272, 0.0
        %v277 = vrot.slane %v276, 4
        %v278 = vadd.f32 %v276, %v277
        %v279 = vrot.slane %v278, 2
        %v280 = vadd.f32 %v278, %v279
        %v281 = vrot.slane %v280, 1
        %v282 = vadd.f32 %v280, %v281
        %v283 = vsel %vm251, %v274, 0.0
        %v284 = vrot.slane %v283, 4
        %v285 = vadd.f32 %v283, %v284
        %v286 = vrot.slane %v285, 2
        %v287 = vadd.f32 %v285, %v286
        %v288 = vrot.slane %v287, 1
        %v289 = vadd.f32 %v287, %v288
        %v290 = vrcp.pop %v282
        %v291 = vmul.f32 1.0, %v290
        %v292 = vrcp.pop %v289
        %v293 = vmul.f32 1.0, %v292
        %v296 = vcombine.low %v291, %v293
        %v298 = vmul.f32 %v272, %v296
        %v299 = vadd.f32 %v298, 1e-08
        %v300 = vsub.f32 1.0, %v299
        %v301 = vmul.f32 %v300, %v300
        %v302 = vlog2.pop %v299
        %v303 = vmul.f32 %v302, 0.6931472
        %v304 = vlaneseq
        %v305 = vshrl.u32 %v304, 7
        %v306 = vlaneseq
        %v307 = vshrl.u32 %v306, 7
        %v308 = vsub.s32 0, %v307
        %v309 = vrot.slane %v247, %v308
        %v310 = vlaneseq
        %v311 = vshrl.u32 %v310, 7
        %v312 = vsub.s32 1, %v311
        %v313 = vrot.slane %v247, %v312
        %vm314 = vcmp.eq.s32.totalorder %v305, %v309
        %vm315 = vcmp.eq.s32.totalorder %v305, %v313
        %v316 = vsel %vm314, -0.25000024, -2.5e-07
        %v317 = vsel %vm315, -0.25000024, -2.5e-07
        %v318 = vmul.f32 %v301, %v303
        %v320 = vcombine.high %v318, %v318
        %v322 = vmul.f32 %v316, %v318
        %v323 = vmul.f32 %v317, %v320
        %v324 = vsel %vm251, %v322, 0.0
        %v325 = vrot.slane %v324, 4
        %v326 = vadd.f32 %v324, %v325
        %v327 = vrot.slane %v326, 2
        %v328 = vadd.f32 %v326, %v327
        %v329 = vrot.slane %v328, 1
        %v330 = vadd.f32 %v328, %v329
        %v331 = vsel %vm251, %v323, 0.0
        %v332 = vrot.slane %v331, 4
        %v333 = vadd.f32 %v331, %v332
        %v334 = vrot.slane %v333, 2
        %v335 = vadd.f32 %v333, %v334
        %v336 = vrot.slane %v335, 1
        %v337 = vadd.f32 %v335, %v336
        %v338 = vld [vmem:[%s232] sm:$0x3]
        %v341 = vcombine.low %v330, %v337
        %v343 = vunpack.c.l.s4 1966171168
        %v344 = vunpack.c.0.s8 %v343
        %v345 = vlaneseq
        %v346 = vshrl.u32 %v345, 7
        %v347 = vsub.s32 %v344, %v346
        %v348 = vrot.slane %v341, %v347
        %v350 = vunpack.c.l.s4 1966171168
        %v351 = vunpack.c.0.s8 %v350
        %v352 = vlaneseq
        %v353 = vshrl.u32 %v352, 7
        %v354 = vsub.s32 %v351, %v353
        %v355 = vrot.slane %v348, %v354
        %v357 = vadd.f32 %v338, %v355
        %v358 = vlaneseq
        %vm359 = vcmp.ge.s32.totalorder %v358, 0
        %vm360 = vcmp.lt.s32.totalorder %v358, 256
        %vm361 = vmand %vm359, %vm360
        %362 = vst.msk [vmem:[%s232] sm:$0x3] %vm361, %v357
        %s363 = sand.u32 %s111, 1
        %s364 = scalar_lea.sflag [#allocation4], %s363
        %s365 = sand.u32 %s111, 1
        %s366 = smul.addr %s365, 2
        %s367 = scalar_lea.vmem [#allocation7], %s366
        // Predicated region
        $region41: #{tpu_custom_call.1} parent=27 // pred_check
          %p368 = pneg %p121
        $region42: #{tpu_custom_call.1} parent=27 // pred_check_branch
          %370 = sbr.rel (%p368) target = $region44
        $region43: #{tpu_custom_call.1} parent=27 // pred_region
          %s372 = ssub.s32 32, 32
          %373 = vsyncadd %s364, %s372
          %s374 = smul.addr %s28, 2
          %s375 = smul.addr %s27, 2
          %s376 = sadd.s32 %s374, %s375
          %s377 = smul.addr %s376, 16
          %s378 = scalar_lea.hbm %s2, %s377
          %s380 = sshll.u32 %s367, 4
          %s381 = int_to_ptr.vmem [resolvable:$true] %s380
          %383 = dma.vmem_to_hbm [thread:$0]  %s381, 32, %s378, %s364
        $region44: #{tpu_custom_call.1} parent=27 // pred_fallthru
          _
      $region28: #{tpu_custom_call.1} parent=5 // pred_fallthru
        _
      %p384 = scmp.le.s32.totalorder 2, %s17
      // Predicated region
      $region45: #{tpu_custom_call.1} parent=5 // pred_check
        %p385 = pneg %p384
      $region46: #{tpu_custom_call.1} parent=5 // pred_check_branch
        %387 = sbr.rel (%p385) target = $region48
      $region47: #{tpu_custom_call.1} parent=5 // pred_region
        %s388 = ssub.s32 %s17, 2
        // Predicated region
        $region49: #{tpu_custom_call.1} parent=47 // pred_check
          %p389 = pneg %p127
        $region50: #{tpu_custom_call.1} parent=47 // pred_check_branch
          %391 = sbr.rel (%p389) target = $region52
        $region51: #{tpu_custom_call.1} parent=47 // pred_region
          %s392 = sand.u32 %s112, 1
          %s393 = scalar_lea.sflag [#allocation4], %s392
          %s394 = sand.u32 %s112, 1
          %s395 = smul.addr %s394, 2
          %s396 = scalar_lea.vmem [#allocation7], %s395
          %397 = dma.done %s393, 32
        $region52: #{tpu_custom_call.1} parent=47 // pred_fallthru
          _
      $region48: #{tpu_custom_call.1} parent=5 // pred_fallthru
        _
    $region6: #{tpu_custom_call.1} parent=1 // loop_footer
      %s21 = sadd.s32 1, %s17
    $region7: #{tpu_custom_call.1} parent=1 // loop_footer_branch
      %16 = sbr.rel target = $region3
    $region8: #{tpu_custom_call.1} parent=1 // loop_exit
      _
    %398 = vsyncpa [#allocation3], 1
    %s399 = scalar_lea.sflag [#allocation3], 1
    %400 = vsyncpa %s399, 1
    %401 = vsyncpa [#allocation6], 1
    %s402 = scalar_lea.sflag [#allocation6], 1
    %403 = vsyncpa %s402, 1
    %404 = vsyncpa [#allocation4], 1
    %s405 = scalar_lea.sflag [#allocation4], 1
    %406 = vsyncpa %s405, 1

</llo_original>
